<compile_context>
chip_gen: v7x
topology: tpu7x:2x2x1
jax: 0.10.0
libtpu: 0.0.40
codegen_flags: <defaults>
</compile_context>

<pallas_src>
import functools
import sys

import jax
import jax.numpy as jnp
from jax.experimental import pallas as pl
from jax.experimental.pallas import tpu as pltpu


def _round_up(n, m):
    return ((n + m - 1) // m) * m


def _sublane(itemsize):
    return {4: 8, 2: 16, 1: 32}.get(itemsize, 8)


def _single_buffer_mode():
    """One-time capability probe: does BlockSpec accept pipeline_mode=pl.Buffered(1)?"""
    if not hasattr(pl, "Buffered"):
        return None
    try:
        mode = pl.Buffered(1)
        pl.BlockSpec((8, 128), lambda i: (0, 0), pipeline_mode=mode)
        return mode
    except (TypeError, ValueError):
        return None


_WEIGHT_PIPELINE_MODE = _single_buffer_mode()


def _vmem_plan():
    """(planning budget, compiler vmem_limit_bytes) derived from the chip generation."""
    try:
        cap = getattr(pltpu.get_tpu_info(), "vmem_capacity_bytes", None)
    except Exception:          # hardware query unavailable -> conservative default
        cap = None
    if not cap:
        cap = 64 * 1024 * 1024          # v7x per-TensorCore size: safe lower bound
    budget = int(cap * 0.80)            # planning budget (headroom for scratch/sems)
    limit = min(int(cap * 0.85), 128 * 1024 * 1024)
    return budget, limit


# ---------------------------------------------------------------------------
# Kernels
# ---------------------------------------------------------------------------

def _ffn_kernel_fused(x_ref, w1_ref, b1_ref, w2_ref, b2_ref, o_ref, *, act):
    # x:(tm,Cp)  W1:(Cp,Hp)  b1:(1,Hp)  W2:(Hp,Cp)  b2:(1,Cp)
    # Native-dtype operands straight to the MXU; accumulate in f32.
    x = x_ref[...].astype(w1_ref.dtype)
    h = jnp.dot(x, w1_ref[...], preferred_element_type=jnp.float32)
    h = act(h + b1_ref[...])
    # TODO(synk): dropout is identity here (inference / eval mode); training parity
    # would need pltpu.prng_seed / prng_random_bits based masking.
    y = jnp.dot(h.astype(w2_ref.dtype), w2_ref[...],
                preferred_element_type=jnp.float32)
    o_ref[...] = (y + b2_ref[...]).astype(o_ref.dtype)


def _ffn_kernel_hsplit(x_ref, w1_ref, b1_ref, w2_ref, b2_ref, o_ref, acc_ref, *, act):
    # Hidden dim split across grid axis 1 ("arbitrary"). act is elementwise in H, so
    # y = sum_h act(x @ W1[:, h] + b1[h]) @ W2[h, :] accumulates exactly in f32.
    hi = pl.program_id(1)

    @pl.when(hi == 0)
    def _():
        acc_ref[...] = jnp.zeros_like(acc_ref)

    x = x_ref[...].astype(w1_ref.dtype)
    h = jnp.dot(x, w1_ref[...], preferred_element_type=jnp.float32)
    h = act(h + b1_ref[...])
    acc_ref[...] += jnp.dot(h.astype(w2_ref.dtype), w2_ref[...],
                            preferred_element_type=jnp.float32)

    @pl.when(hi == pl.num_programs(1) - 1)
    def _():
        o_ref[...] = (acc_ref[...] + b2_ref[...]).astype(o_ref.dtype)


# ---------------------------------------------------------------------------
# Parameter conversion (one-time, at load)
# ---------------------------------------------------------------------------

def convert_conv1d_weights(w1, b1, w2, b2, *, compute_dtype=None):
    """One-time conversion of Conv1d params (out, in, 1)/(out,) to dense (in, out)
    matrices + f32 row-vector biases. Do at parameter-load time, not per call.
    compute_dtype=jnp.bfloat16 optionally casts weights for full-rate MXU (gated,
    not silent: precision tradeoff)."""
    w1m = jnp.transpose(w1[:, :, 0])                 # (C_in, H)
    w2m = jnp.transpose(w2[:, :, 0])                 # (H, C_in)
    if compute_dtype is not None:
        w1m = w1m.astype(compute_dtype)
        w2m = w2m.astype(compute_dtype)
    b1m = b1.astype(jnp.float32).reshape(1, -1)      # (1, H)
    b2m = b2.astype(jnp.float32).reshape(1, -1)      # (1, C_in)
    return w1m, b1m, w2m, b2m


# ---------------------------------------------------------------------------
# Tiling plan
# ---------------------------------------------------------------------------

def _plan_tiles(M, C_p, H_p, x_itemsize, w_itemsize, budget, single_buf_weights):
    """Returns (tile_m, tile_h, use_hidden_split)."""
    sub = _sublane(x_itemsize)
    M_r = _round_up(M, sub)

    def vmem_needed(tm, th, resident_weights):
        if resident_weights:
            nbuf = 1 if single_buf_weights else 2
            wbytes = nbuf * (2 * C_p * H_p * w_itemsize + (H_p + C_p) * 4)
        else:
            # streamed W1/W2/b1 panels (double-buffered) + resident b2
            wbytes = 2 * (2 * C_p * th * w_itemsize + th * 4) + C_p * 4
        act_bytes = (4 * tm * C_p * x_itemsize        # x + out tiles, double-buffered
                     + tm * th * (4 + w_itemsize)     # f32 hidden + cast copy for dot2
                     + tm * C_p * 4)                  # f32 result / accumulator
        return wbytes + act_bytes

    def m_candidates(cap_rows):
        cap_rows = min(cap_rows, M_r)
        if M_r >= 1024:
            # >= 4 grid steps along M: 2 pipelined steps per v7x TensorCore.
            cap_rows = min(cap_rows, _round_up(-(-M_r // 4), sub))
        cap_rows = max(sub, (cap_rows // sub) * sub)
        cands, t = [], cap_rows
        while True:
            cands.append(t)
            if t == sub:
                break
            t = max(sub, ((t // 2) // sub) * sub)
        return cands

    def snap_to_divisor(tm):
        # Prefer a tile that divides M_r exactly (no padded-tail rows, no extra
        # HBM pad copy of the activations), as long as we keep >= half the rows.
        d = tm
        while d >= max(sub, tm // 2):
            if M_r % d == 0:
                return d
            d -= sub
        return tm

    # Fully-fused path: W1/W2 resident, single grid axis over M.
    for tm in m_candidates(1024):
        if vmem_needed(tm, H_p, True) <= budget:
            return snap_to_divisor(tm), H_p, False

    # Hidden-split path: stream (C_p, th)/(th, C_p) weight panels, f32 accumulator.
    for th in (2048, 1024, 512, 256, 128):
        if th > H_p or H_p % th != 0:
            continue
        for tm in m_candidates(512):
            if vmem_needed(tm, th, False) <= budget:
                return snap_to_divisor(tm), th, True

    return sub, 128, True   # last resort (may spill, still correct)


# ---------------------------------------------------------------------------
# pallas_call builder + public wrapper
# ---------------------------------------------------------------------------

def _build_call(Mp, C_p, H_p, tile_m, tile_h, split, out_dtype, act,
                weight_pm, vmem_limit, cost):
    wkw = {"pipeline_mode": weight_pm} if weight_pm is not None else {}
    if split:
        kernel = functools.partial(_ffn_kernel_hsplit, act=act)
        grid = (Mp // tile_m, H_p // tile_h)
        in_specs = [
            pl.BlockSpec((tile_m, C_p), lambda i, h: (i, 0)),          # x tile
            pl.BlockSpec((C_p, tile_h), lambda i, h: (0, h)),          # W1 panel
            pl.BlockSpec((1, tile_h), lambda i, h: (0, h)),            # b1 panel
            pl.BlockSpec((tile_h, C_p), lambda i, h: (h, 0)),          # W2 panel
            pl.BlockSpec((1, C_p), lambda i, h: (0, 0), **wkw),        # b2 (resident)
        ]
        out_specs = pl.BlockSpec((tile_m, C_p), lambda i, h: (i, 0))
        scratch = [pltpu.VMEM((tile_m, C_p), jnp.float32)]
        sems = ("parallel", "arbitrary")
    else:
        kernel = functools.partial(_ffn_kernel_fused, act=act)
        grid = (Mp // tile_m,)
        in_specs = [
            pl.BlockSpec((tile_m, C_p), lambda i: (i, 0)),             # x tile
            pl.BlockSpec((C_p, H_p), lambda i: (0, 0), **wkw),         # W1 (resident)
            pl.BlockSpec((1, H_p), lambda i: (0, 0), **wkw),           # b1
            pl.BlockSpec((H_p, C_p), lambda i: (0, 0), **wkw),         # W2 (resident)
            pl.BlockSpec((1, C_p), lambda i: (0, 0), **wkw),           # b2
        ]
        out_specs = pl.BlockSpec((tile_m, C_p), lambda i: (i, 0))
        scratch = []
        sems = ("parallel",)
    return pl.pallas_call(
        kernel,
        out_shape=jax.ShapeDtypeStruct((Mp, C_p), out_dtype),
        grid_spec=pltpu.PrefetchScalarGridSpec(
            num_scalar_prefetch=0,
            grid=grid,
            in_specs=in_specs,
            out_specs=out_specs,
            scratch_shapes=scratch,
        ),
        compiler_params=pltpu.CompilerParams(
            dimension_semantics=sems,
            vmem_limit_bytes=vmem_limit,
        ),
        cost_estimate=cost,
    )


def pointwise_feed_forward(x, w1m, b1m, w2m, b2m, *, activation="relu",
                           tile_m=None, tile_h=None, force_hsplit=False):
    """x: (B, L, C_in); w1m: (C_in, H); b1m: (1, H); w2m: (H, C_in); b2m: (1, C_in).
    Computes act(x @ W1 + b1) @ W2 + b2 per position (dropout = identity / eval)."""
    B, L, C_in = x.shape
    C_in_w, H = w1m.shape
    assert C_in_w == C_in and w2m.shape == (H, C_in)
    assert b1m.shape == (1, H) and b2m.shape == (1, C_in)

    x_itemsize = jnp.dtype(x.dtype).itemsize
    w_itemsize = jnp.dtype(w1m.dtype).itemsize
    act = (lambda v: jnp.maximum(v, 0.0)) if activation == "relu" else jax.nn.gelu

    # Lane-dense padding of channel dims to multiples of 128. Zero-padding is exact:
    # padded hidden units have zero weights + zero bias -> act(0) = 0 contribution,
    # and padded output channels are sliced off below.
    C_p = _round_up(C_in, 128)
    H_p = _round_up(H, 128)
    if (C_p, H_p) != (C_in, H):
        w1m = jnp.pad(w1m, ((0, C_p - C_in), (0, H_p - H)))
        w2m = jnp.pad(w2m, ((0, H_p - H), (0, C_p - C_in)))
        b1m = jnp.pad(b1m, ((0, 0), (0, H_p - H)))
        b2m = jnp.pad(b2m, ((0, 0), (0, C_p - C_in)))

    M = B * L
    budget, vmem_limit = _vmem_plan()
    single_buf = _WEIGHT_PIPELINE_MODE is not None
    tm_plan, th_plan, split = _plan_tiles(M, C_p, H_p, x_itemsize, w_itemsize,
                                          budget, single_buf)
    if force_hsplit:
        split = True
    if tile_m is None:
        tile_m = tm_plan
    if tile_h is None:
        tile_h = th_plan if split else H_p
    if not split:
        tile_h = H_p
    if H_p % tile_h != 0:
        tile_h = 128

    Mp = _round_up(M, tile_m)
    xm = x.reshape(M, C_in)
    if C_p != C_in or Mp != M:        # skip the HBM pad copy when nothing changes
        xm = jnp.pad(xm, ((0, Mp - M), (0, C_p - C_in)))

    cost = pl.CostEstimate(
        flops=4 * Mp * C_p * H_p,
        transcendentals=0 if activation == "relu" else Mp * H_p,
        bytes_accessed=int(2 * Mp * C_p * x_itemsize
                           + 2 * C_p * H_p * w_itemsize * (Mp // tile_m if split else 1)
                           + (H_p + C_p) * 4),
    )

    args = (xm, w1m, b1m, w2m, b2m)
    call = _build_call(Mp, C_p, H_p, tile_m, tile_h, split, x.dtype, act,
                       _WEIGHT_PIPELINE_MODE, vmem_limit, cost)
    if _WEIGHT_PIPELINE_MODE is not None:
        try:
            out = call(*args)
        except (TypeError, ValueError, NotImplementedError,
                pltpu.LoweringException) as e:
            print("[pointwise_feed_forward] single-buffered weights unsupported "
                  f"({type(e).__name__}); falling back to default double-buffering",
                  file=sys.stderr)
            out = _build_call(Mp, C_p, H_p, tile_m, tile_h, split, x.dtype, act,
                              None, vmem_limit, cost)(*args)
    else:
        out = call(*args)

    if Mp != M or C_p != C_in:        # skip the slice copy when nothing was padded
        out = out[:M, :C_in]
    return out.reshape(B, L, C_in)


def _reference(x, w1, b1, w2, b2):
    w1m = jnp.transpose(w1[:, :, 0])
    w2m = jnp.transpose(w2[:, :, 0])
    h = jnp.maximum(x @ w1m + b1, 0.0)
    return h @ w2m + b2


if __name__ == "__main__":
    # Small shapes: batch=2, seq=8, in_dim=16, hidden=32
    B, L, C_in, H = 2, 8, 16, 32

    key = jax.random.PRNGKey(0)
    kx, kw1, kb1, kw2, kb2 = jax.random.split(key, 5)

    x = jax.random.normal(kx, (B, L, C_in), dtype=jnp.float32)
    # Conv1d weight shapes: (out_channels, in_channels, kernel_size=1); bias (out,)
    w1 = jax.random.normal(kw1, (H, C_in, 1), dtype=jnp.float32) * 0.1
    b1 = jax.random.normal(kb1, (H,), dtype=jnp.float32) * 0.1
    w2 = jax.random.normal(kw2, (C_in, H, 1), dtype=jnp.float32) * 0.1
    b2 = jax.random.normal(kb2, (C_in,), dtype=jnp.float32) * 0.1

    # One-time param conversion (done at load time, not per forward call).
    w1m, b1m, w2m, b2m = convert_conv1d_weights(w1, b1, w2, b2)

    y = pointwise_feed_forward(x, w1m, b1m, w2m, b2m)
    jax.block_until_ready(y)

    y_ref = _reference(x, w1, b1, w2, b2)
    assert y.shape == (B, L, C_in)
    assert jnp.allclose(y, y_ref, atol=1e-5, rtol=1e-5), "mismatch vs reference"

    # Also exercise the hidden-dim-split (accumulator) path on a slightly larger H.
    H2 = 256
    w1b = jax.random.normal(kw1, (H2, C_in, 1), dtype=jnp.float32) * 0.1
    b1b = jax.random.normal(kb1, (H2,), dtype=jnp.float32) * 0.1
    w2b = jax.random.normal(kw2, (C_in, H2, 1), dtype=jnp.float32) * 0.1
    b2b = jax.random.normal(kb2, (C_in,), dtype=jnp.float32) * 0.1
    params2 = convert_conv1d_weights(w1b, b1b, w2b, b2b)
    y2 = pointwise_feed_forward(x, *params2, tile_h=128, force_hsplit=True)
    jax.block_until_ready(y2)
    y2_ref = _reference(x, w1b, b1b, w2b, b2b)
    assert jnp.allclose(y2, y2_ref, atol=1e-5, rtol=1e-5), "hsplit mismatch vs reference"

    print("KERNEL_OK")
</pallas_src>

<mosaic_0001>
module attributes {stable_mosaic.version = 11 : i64} {
  func.func @_ffn_kernel_fused(%arg0: i32, %arg1: memref<16x128xf32, #tpu.memory_space<vmem>>, %arg2: memref<128x128xf32, #tpu.memory_space<vmem>>, %arg3: memref<1x128xf32, #tpu.memory_space<vmem>>, %arg4: memref<128x128xf32, #tpu.memory_space<vmem>>, %arg5: memref<1x128xf32, #tpu.memory_space<vmem>>, %arg6: memref<16x128xf32, #tpu.memory_space<vmem>>) attributes {dimension_semantics = [#tpu.dimension_semantics<parallel>], iteration_bounds = array<i64: 1>, scalar_prefetch = 0 : i64, scratch_operands = 0 : i64, tpu.core_type = #tpu.core_type<tc>, window_params = [{transform_indices = @transform_0, window_bounds = array<i64: 16, 128>}, {pipeline_mode = #tpu.pipeline_mode<synchronous>, transform_indices = @transform_1, window_bounds = array<i64: 128, 128>}, {pipeline_mode = #tpu.pipeline_mode<synchronous>, transform_indices = @transform_2, window_bounds = array<i64: 1, 128>}, {pipeline_mode = #tpu.pipeline_mode<synchronous>, transform_indices = @transform_3, window_bounds = array<i64: 128, 128>}, {pipeline_mode = #tpu.pipeline_mode<synchronous>, transform_indices = @transform_4, window_bounds = array<i64: 1, 128>}, {transform_indices = @transform_5, window_bounds = array<i64: 16, 128>}]} {
    %c0 = arith.constant 0 : index
    %c0_0 = arith.constant 0 : index
    %0 = vector.load %arg1[%c0, %c0_0] : memref<16x128xf32, #tpu.memory_space<vmem>>, vector<16x128xf32>
    %c0_1 = arith.constant 0 : index
    %c0_2 = arith.constant 0 : index
    %1 = vector.load %arg2[%c0_1, %c0_2] : memref<128x128xf32, #tpu.memory_space<vmem>>, vector<128x128xf32>
    %cst = arith.constant dense<0.000000e+00> : vector<16x128xf32>
    %2 = tpu.matmul %0, %1, %cst {dimension_numbers = #tpu.dot_dimension_numbers<[1], [0], [0], [1], [0, 0, 1, 1], [], []>} : vector<16x128xf32>, vector<128x128xf32>, vector<16x128xf32> -> vector<16x128xf32>
    %c0_3 = arith.constant 0 : index
    %c0_4 = arith.constant 0 : index
    %3 = vector.load %arg3[%c0_3, %c0_4] : memref<1x128xf32, #tpu.memory_space<vmem>>, vector<1x128xf32>
    %4 = vector.broadcast %3 : vector<1x128xf32> to vector<16x128xf32>
    %5 = arith.addf %2, %4 : vector<16x128xf32>
    %cst_5 = arith.constant 0.000000e+00 : f32
    %6 = vector.broadcast %cst_5 : f32 to vector<16x128xf32>
    %7 = arith.maximumf %5, %6 : vector<16x128xf32>
    %c0_6 = arith.constant 0 : index
    %c0_7 = arith.constant 0 : index
    %8 = vector.load %arg4[%c0_6, %c0_7] : memref<128x128xf32, #tpu.memory_space<vmem>>, vector<128x128xf32>
    %cst_8 = arith.constant dense<0.000000e+00> : vector<16x128xf32>
    %9 = tpu.matmul %7, %8, %cst_8 {dimension_numbers = #tpu.dot_dimension_numbers<[1], [0], [0], [1], [0, 0, 1, 1], [], []>} : vector<16x128xf32>, vector<128x128xf32>, vector<16x128xf32> -> vector<16x128xf32>
    %c0_9 = arith.constant 0 : index
    %c0_10 = arith.constant 0 : index
    %10 = vector.load %arg5[%c0_9, %c0_10] : memref<1x128xf32, #tpu.memory_space<vmem>>, vector<1x128xf32>
    %11 = vector.broadcast %10 : vector<1x128xf32> to vector<16x128xf32>
    %12 = arith.addf %9, %11 : vector<16x128xf32>
    %c0_11 = arith.constant 0 : index
    %c0_12 = arith.constant 0 : index
    %13 = vector.load %arg6[%c0_11, %c0_12] : memref<16x128xf32, #tpu.memory_space<vmem>>, vector<16x128xf32>
    tpu.vector_store %arg6[%c0_11, %c0_12], %12 {strides = array<i32>} : memref<16x128xf32, #tpu.memory_space<vmem>>, vector<16x128xf32>,
    return
  }
  func.func @transform_0(%arg0: i32) -> (i32, i32) {
    %c0_i32 = arith.constant 0 : i32
    %c0_i32_0 = arith.constant 0 : i32
    return %arg0, %c0_i32 : i32, i32
  }
  func.func @transform_1(%arg0: i32) -> (i32, i32) {
    %c0_i32 = arith.constant 0 : i32
    %c0_i32_0 = arith.constant 0 : i32
    %c0_i32_1 = arith.constant 0 : i32
    return %c0_i32, %c0_i32_0 : i32, i32
  }
  func.func @transform_2(%arg0: i32) -> (i32, i32) {
    %c0_i32 = arith.constant 0 : i32
    %c0_i32_0 = arith.constant 0 : i32
    %c0_i32_1 = arith.constant 0 : i32
    return %c0_i32, %c0_i32_0 : i32, i32
  }
  func.func @transform_3(%arg0: i32) -> (i32, i32) {
    %c0_i32 = arith.constant 0 : i32
    %c0_i32_0 = arith.constant 0 : i32
    %c0_i32_1 = arith.constant 0 : i32
    return %c0_i32, %c0_i32_0 : i32, i32
  }
  func.func @transform_4(%arg0: i32) -> (i32, i32) {
    %c0_i32 = arith.constant 0 : i32
    %c0_i32_0 = arith.constant 0 : i32
    %c0_i32_1 = arith.constant 0 : i32
    return %c0_i32, %c0_i32_0 : i32, i32
  }
  func.func @transform_5(%arg0: i32) -> (i32, i32) {
    %c0_i32 = arith.constant 0 : i32
    %c0_i32_0 = arith.constant 0 : i32
    return %arg0, %c0_i32 : i32, i32
  }
}

</mosaic_0001>

<llo_original>
// kernel: tpu_custom_call.1
$region0: #{tpu_custom_call.1}
  #allocation0 [shape = 'u32[]', space=smem, size = 0x4, offset = 0x4, fixed_abs, tag = 'smem constant byte address 0x4 - core index']
  #allocation1 [shape = 'u32[144,128]{1,0:T(1,128)}', space=vmem, size = 0x12000, scoped, tag = 'internal scratch']
  %s0 = inlined_call_operand.hbm [shape: f32[16,128], index: 0, kind: input, shape index: {}]
  %s1 = inlined_call_operand.hbm [shape: f32[128,128], index: 1, kind: input, shape index: {}]
  %s2 = inlined_call_operand.vmem [shape: f32[1,128], index: 2, kind: input, shape index: {}]
  %s3 = inlined_call_operand.hbm [shape: f32[128,128], index: 3, kind: input, shape index: {}]
  %s4 = inlined_call_operand.vmem [shape: f32[1,128], index: 4, kind: input, shape index: {}]
  %s5 = inlined_call_operand.hbm [shape: f32[16,128], index: 5, kind: output, shape index: {}]
  %s6 = sld [smem:[#allocation0]]
  $region42: #{tpu_custom_call.1} parent=0
    _
  %s8 = ssub.s32 1, %s6
  %s9 = scalar_select 0, %s8, %s6
  $region1: #{tpu_custom_call.1} parent=0
    #allocation2 [shape = 'u8[8192]{0}', space=vmem, size = 0x2000, scoped, tag = 'input window, operand 0, single buffered']
    #allocation3 [shape = 's32[1]{0}', space=sflag, size = 0x4, scoped, tag = 'scoped memory for tpu_custom_call.1']
    #allocation4 [shape = 's32[1]{0}', space=sflag, size = 0x4, scoped, tag = 'scoped memory for tpu_custom_call.1']
    #allocation5 [shape = 'u8[65536]{0}', space=vmem, size = 0x10000, scoped, tag = 'input window, operand 1, single buffered']
    #allocation6 [shape = 's32[1]{0}', space=sflag, size = 0x4, scoped, tag = 'scoped memory for tpu_custom_call.1']
    #allocation7 [shape = 'u8[65536]{0}', space=vmem, size = 0x10000, scoped, tag = 'input window, operand 3, single buffered']
    #allocation8 [shape = 'u8[8192]{0}', space=vmem, size = 0x2000, scoped, tag = 'output window, operand 0, single buffered']
    %10 = vsyncpa [#allocation3], 0
    %11 = vsyncpa [#allocation6], 0
    %12 = vsyncpa [#allocation4], 0
    // Predicated region
    $region2: #{tpu_custom_call.1} parent=1 // pred_check
      _
    $region3: #{tpu_custom_call.1} parent=1 // pred_check_branch
      %14 = sbr.rel (0) target = $region5
    $region4: #{tpu_custom_call.1} parent=1 // pred_region
      %s16 = ssub.s32 256, 256
      %17 = vsyncadd [#allocation3], %s16
      %s18 = sshll.u32 [#allocation2], 4
      %s19 = int_to_ptr.vmem [resolvable:$true] %s18
      %24 = dma.hbm_to_vmem [thread:$0]  %s0, 256, %s19, [#allocation3], 128, 128, 8
    $region5: #{tpu_custom_call.1} parent=1 // pred_fallthru
      _
    // Predicated region
    $region6: #{tpu_custom_call.1} parent=1 // pred_check
      _
    $region7: #{tpu_custom_call.1} parent=1 // pred_check_branch
      %26 = sbr.rel (0) target = $region9
    $region8: #{tpu_custom_call.1} parent=1 // pred_region
      %s28 = ssub.s32 2048, 2048
      %29 = vsyncadd [#allocation6], %s28
      %s30 = sshll.u32 [#allocation5], 4
      %s31 = int_to_ptr.vmem [resolvable:$true] %s30
      %36 = dma.hbm_to_vmem [thread:$0]  %s1, 2048, %s31, [#allocation6], 128, 128, 8
    $region9: #{tpu_custom_call.1} parent=1 // pred_fallthru
      _
    // Predicated region
    $region10: #{tpu_custom_call.1} parent=1 // pred_check
      _
    $region11: #{tpu_custom_call.1} parent=1 // pred_check_branch
      %38 = sbr.rel (0) target = $region13
    $region12: #{tpu_custom_call.1} parent=1 // pred_region
      _
    $region13: #{tpu_custom_call.1} parent=1 // pred_fallthru
      _
    // Predicated region
    $region14: #{tpu_custom_call.1} parent=1 // pred_check
      _
    $region15: #{tpu_custom_call.1} parent=1 // pred_check_branch
      %40 = sbr.rel (0) target = $region17
    $region16: #{tpu_custom_call.1} parent=1 // pred_region
      %s42 = ssub.s32 2048, 2048
      %43 = vsyncadd [#allocation6], %s42
      %s44 = sshll.u32 [#allocation7], 4
      %s45 = int_to_ptr.vmem [resolvable:$true] %s44
      %50 = dma.hbm_to_vmem [thread:$0]  %s3, 2048, %s45, [#allocation6], 128, 128, 8
    $region17: #{tpu_custom_call.1} parent=1 // pred_fallthru
      _
    // Predicated region
    $region18: #{tpu_custom_call.1} parent=1 // pred_check
      _
    $region19: #{tpu_custom_call.1} parent=1 // pred_check_branch
      %52 = sbr.rel (0) target = $region21
    $region20: #{tpu_custom_call.1} parent=1 // pred_region
      _
    $region21: #{tpu_custom_call.1} parent=1 // pred_fallthru
      _
    // Predicated region
    $region22: #{tpu_custom_call.1} parent=1 // pred_check
      _
    $region23: #{tpu_custom_call.1} parent=1 // pred_check_branch
      %54 = sbr.rel (0) target = $region25
    $region24: #{tpu_custom_call.1} parent=1 // pred_region
      %55 = dma.done [#allocation3], 256
    $region25: #{tpu_custom_call.1} parent=1 // pred_fallthru
      _
    // Predicated region
    $region26: #{tpu_custom_call.1} parent=1 // pred_check
      _
    $region27: #{tpu_custom_call.1} parent=1 // pred_check_branch
      %57 = sbr.rel (0) target = $region29
    $region28: #{tpu_custom_call.1} parent=1 // pred_region
      %58 = dma.done [#allocation6], 2048
    $region29: #{tpu_custom_call.1} parent=1 // pred_fallthru
      _
    // Predicated region
    $region30: #{tpu_custom_call.1} parent=1 // pred_check
      _
    $region31: #{tpu_custom_call.1} parent=1 // pred_check_branch
      %60 = sbr.rel (0) target = $region33
    $region32: #{tpu_custom_call.1} parent=1 // pred_region
      %61 = dma.done [#allocation6], 2048
    $region33: #{tpu_custom_call.1} parent=1 // pred_fallthru
      _
    %v62 = vld [vmem:[#allocation2] sm:$0xff]
    %v63 = vld [vmem:[#allocation2 + $0x8] sm:$0xff]
    %v64 = vld [vmem:[#allocation5] sm:$0xff]
    %v65 = vld [vmem:[#allocation5 + $0x8] sm:$0xff]
    %v66 = vld [vmem:[#allocation5 + $0x10] sm:$0xff]
    %v67 = vld [vmem:[#allocation5 + $0x18] sm:$0xff]
    %v68 = vld [vmem:[#allocation5 + $0x20] sm:$0xff]
    %v69 = vld [vmem:[#allocation5 + $0x28] sm:$0xff]
    %v70 = vld [vmem:[#allocation5 + $0x30] sm:$0xff]
    %v71 = vld [vmem:[#allocation5 + $0x38] sm:$0xff]
    %v72 = vld [vmem:[#allocation5 + $0x40] sm:$0xff]
    %v73 = vld [vmem:[#allocation5 + $0x48] sm:$0xff]
    %v74 = vld [vmem:[#allocation5 + $0x50] sm:$0xff]
    %v75 = vld [vmem:[#allocation5 + $0x58] sm:$0xff]
    %v76 = vld [vmem:[#allocation5 + $0x60] sm:$0xff]
    %v77 = vld [vmem:[#allocation5 + $0x68] sm:$0xff]
    %v78 = vld [vmem:[#allocation5 + $0x70] sm:$0xff]
    %v79 = vld [vmem:[#allocation5 + $0x78] sm:$0xff]
    %v80 = vld [vmem:[%s2] sm:$0x1]
    %v82 = vlaneseq
    %v83 = vshrl.u32 %v82, 7
    %v84 = vsub.s32 0, %v83
    %v85 = vrot.slane %v80, %v84
    %87 = vmatprep.subr.mxu0 0.0
    %88 = vmatpush1.msra.mxu0 %v64
    %89 = vmatprep.subr.mxu0 0.0
    %90 = vmatpush1.msra.mxu0 %v65
    %91 = vmatprep.subr.mxu0 0.0
    %92 = vmatpush1.msra.mxu0 %v66
    %93 = vmatprep.subr.mxu0 0.0
    %94 = vmatpush1.msra.mxu0 %v67
    %95 = vmatprep.subr.mxu0 0.0
    %96 = vmatpush1.msra.mxu0 %v68
    %97 = vmatprep.subr.mxu0 0.0
    %98 = vmatpush1.msra.mxu0 %v69
    %99 = vmatprep.subr.mxu0 0.0
    %100 = vmatpush1.msra.mxu0 %v70
    %101 = vmatprep.subr.mxu0 0.0
    %102 = vmatpush1.msra.mxu0 %v71
    %103 = vmatprep.subr.mxu0 0.0
    %104 = vmatpush1.msra.mxu0 %v72
    %105 = vmatprep.subr.mxu0 0.0
    %106 = vmatpush1.msra.mxu0 %v73
    %107 = vmatprep.subr.mxu0 0.0
    %108 = vmatpush1.msra.mxu0 %v74
    %109 = vmatprep.subr.mxu0 0.0
    %110 = vmatpush1.msra.mxu0 %v75
    %111 = vmatprep.subr.mxu0 0.0
    %112 = vmatpush1.msra.mxu0 %v76
    %113 = vmatprep.subr.mxu0 0.0
    %114 = vmatpush1.msra.mxu0 %v77
    %115 = vmatprep.subr.mxu0 0.0
    %116 = vmatpush1.msra.mxu0 %v78
    %117 = vmatprep.subr.mxu0 0.0
    %118 = vmatpush1.msra.mxu0 %v79
    %119 = vmatprep.subr.mxu0 0.0
    %120 = vmatpush1.msra.mxu0 0.0
    %121 = vmatprep.subr.mxu0 0.0
    %122 = vmatpush1.msra.mxu0 0.0
    %123 = vmatprep.subr.mxu0 0.0
    %124 = vmatpush1.msra.mxu0 0.0
    %125 = vmatprep.subr.mxu0 0.0
    %126 = vmatpush1.msra.mxu0 0.0
    %127 = vmatprep.subr.mxu0 0.0
    %128 = vmatpush1.msra.mxu0 0.0
    %129 = vmatprep.subr.mxu0 0.0
    %130 = vmatpush1.msra.mxu0 0.0
    %131 = vmatprep.subr.mxu0 0.0
    %132 = vmatpush1.msra.mxu0 0.0
    %133 = vmatprep.subr.mxu0 0.0
    %134 = vmatpush1.msra.mxu0 0.0
    %135 = vmatprep.subr.mxu0 0.0
    %136 = vmatpush1.msra.mxu0 0.0
    %137 = vmatprep.subr.mxu0 0.0
    %138 = vmatpush1.msra.mxu0 0.0
    %139 = vmatprep.subr.mxu0 0.0
    %140 = vmatpush1.msra.mxu0 0.0
    %141 = vmatprep.subr.mxu0 0.0
    %142 = vmatpush1.msra.mxu0 0.0
    %143 = vmatprep.subr.mxu0 0.0
    %144 = vmatpush1.msra.mxu0 0.0
    %145 = vmatprep.subr.mxu0 0.0
    %146 = vmatpush1.msra.mxu0 0.0
    %147 = vmatprep.subr.mxu0 0.0
    %148 = vmatpush1.msra.mxu0 0.0
    %149 = vmatprep.subr.mxu0 0.0
    %150 = vmatpush1.msra.mxu0 0.0
    %151 = vmatprep.mubr.f32.mxu0 0.0
    %152 = vmatmul.mubr.f32.gmra.mrb[0].mxu0 %v62
    %v153 = vpop.f32.mrb[0].mxu0
    %v154 = vadd.f32 %v85, %v153
    %v155 = vpop.f32.mrb[0].mxu0
    %156 = vmatprep.mubr.f32.mxu0 0.0
    %157 = vmatmul.mubr.f32.gmra.mrb[0].mxu0 %v63
    %v158 = vpop.f32.mrb[0].mxu0
    %v159 = vadd.f32 %v85, %v158
    %v160 = vpop.f32.mrb[0].mxu0
    %161 = vdwg.mxu0
    %v162 = vmax.f32 %v154, 0.0
    %v163 = vmax.f32 %v159, 0.0
    %v164 = vld [vmem:[#allocation7] sm:$0xff]
    %v165 = vld [vmem:[#allocation7 + $0x8] sm:$0xff]
    %v166 = vld [vmem:[#allocation7 + $0x10] sm:$0xff]
    %v167 = vld [vmem:[#allocation7 + $0x18] sm:$0xff]
    %v168 = vld [vmem:[#allocation7 + $0x20] sm:$0xff]
    %v169 = vld [vmem:[#allocation7 + $0x28] sm:$0xff]
    %v170 = vld [vmem:[#allocation7 + $0x30] sm:$0xff]
    %v171 = vld [vmem:[#allocation7 + $0x38] sm:$0xff]
    %v172 = vld [vmem:[#allocation7 + $0x40] sm:$0xff]
    %v173 = vld [vmem:[#allocation7 + $0x48] sm:$0xff]
    %v174 = vld [vmem:[#allocation7 + $0x50] sm:$0xff]
    %v175 = vld [vmem:[#allocation7 + $0x58] sm:$0xff]
    %v176 = vld [vmem:[#allocation7 + $0x60] sm:$0xff]
    %v177 = vld [vmem:[#allocation7 + $0x68] sm:$0xff]
    %v178 = vld [vmem:[#allocation7 + $0x70] sm:$0xff]
    %v179 = vld [vmem:[#allocation7 + $0x78] sm:$0xff]
    %v180 = vld [vmem:[%s4] sm:$0x1]
    %v182 = vlaneseq
    %v183 = vshrl.u32 %v182, 7
    %v184 = vsub.s32 0, %v183
    %v185 = vrot.slane %v180, %v184
    %187 = vmatprep.subr.mxu0 0.0
    %188 = vmatpush1.msra.mxu0 %v164
    %189 = vmatprep.subr.mxu0 0.0
    %190 = vmatpush1.msra.mxu0 %v165
    %191 = vmatprep.subr.mxu0 0.0
    %192 = vmatpush1.msra.mxu0 %v166
    %193 = vmatprep.subr.mxu0 0.0
    %194 = vmatpush1.msra.mxu0 %v167
    %195 = vmatprep.subr.mxu0 0.0
    %196 = vmatpush1.msra.mxu0 %v168
    %197 = vmatprep.subr.mxu0 0.0
    %198 = vmatpush1.msra.mxu0 %v169
    %199 = vmatprep.subr.mxu0 0.0
    %200 = vmatpush1.msra.mxu0 %v170
    %201 = vmatprep.subr.mxu0 0.0
    %202 = vmatpush1.msra.mxu0 %v171
    %203 = vmatprep.subr.mxu0 0.0
    %204 = vmatpush1.msra.mxu0 %v172
    %205 = vmatprep.subr.mxu0 0.0
    %206 = vmatpush1.msra.mxu0 %v173
    %207 = vmatprep.subr.mxu0 0.0
    %208 = vmatpush1.msra.mxu0 %v174
    %209 = vmatprep.subr.mxu0 0.0
    %210 = vmatpush1.msra.mxu0 %v175
    %211 = vmatprep.subr.mxu0 0.0
    %212 = vmatpush1.msra.mxu0 %v176
    %213 = vmatprep.subr.mxu0 0.0
    %214 = vmatpush1.msra.mxu0 %v177
    %215 = vmatprep.subr.mxu0 0.0
    %216 = vmatpush1.msra.mxu0 %v178
    %217 = vmatprep.subr.mxu0 0.0
    %218 = vmatpush1.msra.mxu0 %v179
    %219 = vmatprep.subr.mxu0 0.0
    %220 = vmatpush1.msra.mxu0 0.0
    %221 = vmatprep.subr.mxu0 0.0
    %222 = vmatpush1.msra.mxu0 0.0
    %223 = vmatprep.subr.mxu0 0.0
    %224 = vmatpush1.msra.mxu0 0.0
    %225 = vmatprep.subr.mxu0 0.0
    %226 = vmatpush1.msra.mxu0 0.0
    %227 = vmatprep.subr.mxu0 0.0
    %228 = vmatpush1.msra.mxu0 0.0
    %229 = vmatprep.subr.mxu0 0.0
    %230 = vmatpush1.msra.mxu0 0.0
    %231 = vmatprep.subr.mxu0 0.0
    %232 = vmatpush1.msra.mxu0 0.0
    %233 = vmatprep.subr.mxu0 0.0
    %234 = vmatpush1.msra.mxu0 0.0
    %235 = vmatprep.subr.mxu0 0.0
    %236 = vmatpush1.msra.mxu0 0.0
    %237 = vmatprep.subr.mxu0 0.0
    %238 = vmatpush1.msra.mxu0 0.0
    %239 = vmatprep.subr.mxu0 0.0
    %240 = vmatpush1.msra.mxu0 0.0
    %241 = vmatprep.subr.mxu0 0.0
    %242 = vmatpush1.msra.mxu0 0.0
    %243 = vmatprep.subr.mxu0 0.0
    %244 = vmatpush1.msra.mxu0 0.0
    %245 = vmatprep.subr.mxu0 0.0
    %246 = vmatpush1.msra.mxu0 0.0
    %247 = vmatprep.subr.mxu0 0.0
    %248 = vmatpush1.msra.mxu0 0.0
    %249 = vmatprep.subr.mxu0 0.0
    %250 = vmatpush1.msra.mxu0 0.0
    %251 = vmatprep.mubr.f32.mxu0 0.0
    %252 = vmatmul.mubr.f32.gmra.mrb[0].mxu0 %v162
    %v253 = vpop.f32.mrb[0].mxu0
    %v254 = vadd.f32 %v185, %v253
    %v255 = vpop.f32.mrb[0].mxu0
    %256 = vmatprep.mubr.f32.mxu0 0.0
    %257 = vmatmul.mubr.f32.gmra.mrb[0].mxu0 %v163
    %v258 = vpop.f32.mrb[0].mxu0
    %v259 = vadd.f32 %v185, %v258
    %v260 = vpop.f32.mrb[0].mxu0
    %261 = vdwg.mxu0
    %262 = vst [vmem:[#allocation8] sm:$0xff] %v254
    %263 = vst [vmem:[#allocation8 + $0x8] sm:$0xff] %v259
    // Predicated region
    $region34: #{tpu_custom_call.1} parent=1 // pred_check
      _
    $region35: #{tpu_custom_call.1} parent=1 // pred_check_branch
      %265 = sbr.rel (0) target = $region37
    $region36: #{tpu_custom_call.1} parent=1 // pred_region
      %s267 = ssub.s32 256, 256
      %268 = vsyncadd [#allocation4], %s267
      %s269 = sshll.u32 [#allocation8], 4
      %s270 = int_to_ptr.vmem [resolvable:$true] %s269
      %275 = dma.vmem_to_hbm [thread:$0]  %s270, 256, %s5, [#allocation4], 128, 128, 8
    $region37: #{tpu_custom_call.1} parent=1 // pred_fallthru
      _
    // Predicated region
    $region38: #{tpu_custom_call.1} parent=1 // pred_check
      _
    $region39: #{tpu_custom_call.1} parent=1 // pred_check_branch
      %277 = sbr.rel (0) target = $region41
    $region40: #{tpu_custom_call.1} parent=1 // pred_region
      %278 = dma.done [#allocation4], 256
    $region41: #{tpu_custom_call.1} parent=1 // pred_fallthru
      _
    %279 = vsyncpa [#allocation3], 1
    %280 = vsyncpa [#allocation6], 1
    %281 = vsyncpa [#allocation4], 1

</llo_original>
